<compile_context>
chip_gen: v5e
topology: v5e:2x2
jax: 0.10.0
libtpu: 0.0.40
codegen_flags: <defaults>
</compile_context>

<pallas_src>
import functools

import jax
import jax.numpy as jnp
from jax.experimental import pallas as pl
from jax.experimental.pallas import tpu as pltpu

_NEG_FILL = float(-jnp.finfo(jnp.float32).max)   # matches torch masked_fill(-finfo.max)


def _flash_attn_kernel(*refs, scale, causal, has_mask, kv_offset, mm_dtype, exp_dtype):
    if has_mask:
        q_ref, k_ref, v_ref, mask_ref, o_ref, qs_sc, m_sc, l_sc, acc_sc = refs
    else:
        q_ref, k_ref, v_ref, o_ref, qs_sc, m_sc, l_sc, acc_sc = refs
        mask_ref = None

    _, H, tq, D = q_ref.shape          # q block: (1, H, tq, D)
    tk = k_ref.shape[1]                # k/v block: (1, tk, D)
    R = H * tq

    qi = pl.program_id(1)
    ki = pl.program_id(2)
    num_kv = pl.num_programs(2)

    @pl.when(ki == 0)
    def _init():
        m_sc[...] = jnp.full(m_sc.shape, _NEG_FILL, m_sc.dtype)
        l_sc[...] = jnp.zeros(l_sc.shape, l_sc.dtype)
        acc_sc[...] = jnp.zeros(acc_sc.shape, acc_sc.dtype)
        # kv-invariant work hoisted out of the kv loop: fold all heads into the
        # MXU rows and fold 1/sqrt(D) into q ONCE per (batch, q-tile).
        qs = q_ref[0].astype(jnp.float32).reshape(R, D) * scale
        qs_sc[...] = qs.astype(qs_sc.dtype)

    def _update(apply_causal):
        k = k_ref[0]
        if k.dtype != mm_dtype:
            k = k.astype(mm_dtype)
        # score tile = q @ k^T, f32 accumulation on the MXU: (H*tq, tk)
        s = jax.lax.dot_general(qs_sc[...], k, (((1,), (1,)), ((), ())),
                                preferred_element_type=jnp.float32)

        keep = None
        if has_mask:
            keep = mask_ref[0] != 0                                   # (1, tk)
        if apply_causal:
            # 1-D position vectors (O(H*tq + tk) int work), broadcast-compared.
            row = jax.lax.broadcasted_iota(jnp.int32, (R, 1), 0)
            if H > 1:
                row = row % tq
            q_pos = qi * tq + row + kv_offset                         # (R, 1)
            k_pos = ki * tk + jax.lax.broadcasted_iota(jnp.int32, (1, tk), 1)
            ck = k_pos <= q_pos
            keep = ck if keep is None else jnp.logical_and(keep, ck)
        if keep is not None:
            s = jnp.where(keep, s, _NEG_FILL)                         # single select

        # online softmax update
        m_prev = m_sc[...]
        m_new = jnp.maximum(m_prev, jnp.max(s, axis=-1, keepdims=True))
        alpha = jnp.exp(m_prev - m_new)
        p = jnp.exp((s - m_new).astype(exp_dtype))
        l_sc[...] = alpha * l_sc[...] + jnp.sum(
            p, axis=-1, keepdims=True, dtype=jnp.float32)
        v = v_ref[0]
        if v.dtype != mm_dtype:
            v = v.astype(mm_dtype)
        acc_sc[...] = alpha * acc_sc[...] + jnp.dot(
            p.astype(mm_dtype), v, preferred_element_type=jnp.float32)
        m_sc[...] = m_new

    if causal:
        # Three regimes per (qi, ki) tile:
        #   skip     : whole tile above the diagonal          -> no compute at all
        #   interior : whole tile on/below the diagonal       -> update, no causal mask
        #   band     : tile straddles the diagonal            -> update with causal mask
        q_lo = qi * tq + kv_offset
        q_hi = qi * tq + (tq - 1) + kv_offset
        k_lo = ki * tk
        k_hi = ki * tk + (tk - 1)
        pl.when(k_hi <= q_lo)(lambda: _update(False))
        pl.when(jnp.logical_and(k_lo <= q_hi, k_hi > q_lo))(lambda: _update(True))
    else:
        _update(False)

    @pl.when(ki == num_kv - 1)
    def _finalize():
        # Exact reciprocal: epilogue runs once per kv sweep, so approx=True saves
        # nothing measurable while exact keeps the output tolerance tight.
        out = acc_sc[...] * pl.reciprocal(l_sc[...], approx=False)
        o_ref[0] = out.reshape(H, tq, D).astype(o_ref.dtype)
        # TODO(synk): attention dropout (p > 0) not implemented (needs pltpu PRNG).
        # TODO(synk): a fully lane-dense (B, N, H*D) output layout would need a
        # head-interleaved store + external transpose; kept (B,H,N,D) for drop-in
        # semantics (epilogue-only cost).


def attention(q, k, v, mask=None, *, causal=False, q_tile=256, kv_tile=256,
              use_bf16_matmul=False, use_bf16_exp=False):
    """Pallas equivalent of Attention.forward (use_flash_attn=False path)."""
    B, H, N, D = q.shape
    Nk = k.shape[1]
    scale = float(D) ** -0.5
    kv_offset = Nk - N          # aligns queries to the end of the key axis (==triu(1) when N==Nk)

    # ---- tile selection ---------------------------------------------------
    # Cap H*tq around 1024 rows so the (H*tq, tk) f32 score/prob transients,
    # the f32 accumulator and double-buffered blocks fit comfortably in v7x's
    # 64 MiB VMEM / v5e's scoped default.
    row_cap = max(8, (1024 // max(H, 1)) // 8 * 8)
    tq = min(q_tile, row_cap, N)
    if tq < N:
        tq = max(8, (tq // 8) * 8)                       # sublane-aligned when tiling
    tk = min(kv_tile, Nk)
    if tk < Nk:
        tk = (tk // 128) * 128 if tk >= 128 else max(8, (tk // 8) * 8)  # lane-friendly

    # ---- pad to tile multiples (keeps block shapes layout-legal) -----------
    n_pad = (-N) % tq
    k_pad = (-Nk) % tk
    if k_pad and mask is None:
        mask = jnp.ones((B, Nk), dtype=jnp.bool_)
    if k_pad:
        k = jnp.pad(k, ((0, 0), (0, k_pad), (0, 0)))
        v = jnp.pad(v, ((0, 0), (0, k_pad), (0, 0)))
        mask = jnp.pad(mask, ((0, 0), (0, k_pad)))       # pads with False (drop padded keys)
    if n_pad:
        q = jnp.pad(q, ((0, 0), (0, 0), (0, n_pad), (0, 0)))
    Np, Nkp = N + n_pad, Nk + k_pad
    n_q, n_k = Np // tq, Nkp // tk
    has_mask = mask is not None

    mm_dtype = jnp.bfloat16 if (use_bf16_matmul and q.dtype == jnp.float32) else q.dtype
    exp_dtype = jnp.bfloat16 if use_bf16_exp else jnp.float32

    kernel = functools.partial(
        _flash_attn_kernel, scale=scale, causal=causal, has_mask=has_mask,
        kv_offset=kv_offset, mm_dtype=mm_dtype, exp_dtype=exp_dtype)

    # When causal, clamp the K/V (and mask) block index to the last kv tile this
    # q-tile can see: the pipeline then re-uses the resident block for all skipped
    # steps and issues no HBM traffic for them (~2x K/V read savings).
    if causal:
        def _kv_last(qi):
            return jnp.clip((qi * tq + (tq - 1) + kv_offset) // tk, 0, n_k - 1)
        kv_map = lambda b, qi, ki: (b, jnp.minimum(ki, _kv_last(qi)), 0)
        mask_map = lambda b, qi, ki: (b, 0, jnp.minimum(ki, _kv_last(qi)))
    else:
        kv_map = lambda b, qi, ki: (b, ki, 0)
        mask_map = lambda b, qi, ki: (b, 0, ki)

    in_specs = [
        pl.BlockSpec((1, H, tq, D), lambda b, qi, ki: (b, 0, qi, 0)),   # q
        pl.BlockSpec((1, tk, D), kv_map),                               # k
        pl.BlockSpec((1, tk, D), kv_map),                               # v
    ]
    args = [q, k, v]
    if has_mask:
        args.append(mask.astype(jnp.int32).reshape(B, 1, Nkp))
        in_specs.append(pl.BlockSpec((1, 1, tk), mask_map))

    itemsize = lambda a: a.size * a.dtype.itemsize
    work = B * H * N * Nk
    if causal:
        work //= 2
    kv_stream = (itemsize(k) + itemsize(v)) * n_q
    if causal:
        kv_stream //= 2
    cost = pl.CostEstimate(
        flops=4 * work * D,                    # QK^T + attn@V (halved when causal)
        transcendentals=work,                  # exp
        bytes_accessed=(2 * itemsize(q) + kv_stream
                        + (B * Nkp * 4 * n_q if has_mask else 0)))

    # VMEM budget: double-buffered blocks + scratch + score/prob transients.
    mm_isz = jnp.dtype(mm_dtype).itemsize
    in_isz = q.dtype.itemsize
    est = (4 * H * tq * D * in_isz             # q + out blocks, 2 buffers each
           + 4 * tk * D * in_isz               # k + v blocks, 2 buffers each
           + (2 * tk * 4 if has_mask else 0)
           + H * tq * D * mm_isz               # hoisted scaled-q scratch
           + 2 * H * tq * 128 * 4              # m, l (lane-padded)
           + H * tq * D * 4                    # acc
           + 4 * H * tq * tk * 4)              # s / p / select transients + slack
    vmem_limit = int(min(max(2 * est, 32 * 1024 * 1024), 56 * 1024 * 1024))

    out = pl.pallas_call(
        kernel,
        out_shape=jax.ShapeDtypeStruct((B, H, Np, D), q.dtype),
        grid=(B, n_q, n_k),
        in_specs=in_specs,
        out_specs=pl.BlockSpec((1, H, tq, D), lambda b, qi, ki: (b, 0, qi, 0)),
        scratch_shapes=[
            pltpu.VMEM((H * tq, D), mm_dtype),      # scaled, head-folded q (hoisted)
            pltpu.VMEM((H * tq, 1), jnp.float32),   # running row max  m
            pltpu.VMEM((H * tq, 1), jnp.float32),   # running denom    l
            pltpu.VMEM((H * tq, D), jnp.float32),   # running output   acc
        ],
        compiler_params=pltpu.CompilerParams(
            dimension_semantics=("parallel", "parallel", "arbitrary"),
            vmem_limit_bytes=vmem_limit),
        cost_estimate=cost,
    )(*args)
    # TODO(synk): for v7x megacore with B == 1 and n_q == 1, a head-group grid axis
    # would be needed to occupy both TensorCores; not added here.
    if n_pad:
        out = out[:, :, :N, :]
    return out


def _reference(q, k, v, mask=None, *, causal=False):
    """Plain-JAX mirror of the PyTorch forward, for verification."""
    scale = q.shape[-1] ** -0.5
    sim = jnp.einsum('bhid,bjd->bhij', q.astype(jnp.float32),
                     k.astype(jnp.float32)) * scale
    neg = -jnp.finfo(jnp.float32).max
    if mask is not None:
        sim = jnp.where(mask[:, None, None, :], sim, neg)
    if causal:
        n, nk = q.shape[-2], k.shape[1]
        i = jnp.arange(n)[:, None]
        j = jnp.arange(nk)[None, :]
        cm = j > (i + nk - n)     # == triu(1) when n == nk (the torch-supported case)
        sim = jnp.where(cm[None, None], neg, sim)
    attn = jax.nn.softmax(sim, axis=-1)
    return jnp.einsum('bhij,bjd->bhid', attn,
                      v.astype(jnp.float32)).astype(q.dtype)


if __name__ == "__main__":
    def _check(out, ref, name, atol=1e-4, rtol=1e-4):
        assert out.shape == ref.shape, name
        ok = jnp.allclose(out, ref, atol=atol, rtol=rtol)
        err = float(jnp.max(jnp.abs(out.astype(jnp.float32) - ref.astype(jnp.float32))))
        assert ok, (name, err)

    key = jax.random.PRNGKey(0)
    kq, kk, kv_, km = jax.random.split(key, 4)

    # small shapes consistent with the module: 'b h i d' / 'b j d'
    B, H, N, D = 2, 4, 8, 32
    Nk = 8
    q = jax.random.normal(kq, (B, H, N, D), dtype=jnp.float32)
    k = jax.random.normal(kk, (B, Nk, D), dtype=jnp.float32)
    v = jax.random.normal(kv_, (B, Nk, D), dtype=jnp.float32)
    mask = jax.random.bernoulli(km, 0.8, (B, Nk))

    # 1) default config (mask=None, causal=False)
    out = attention(q, k, v)
    jax.block_until_ready(out)
    _check(out, _reference(q, k, v), "plain")

    # 2) key-padding mask only
    out = attention(q, k, v, mask=mask)
    jax.block_until_ready(out)
    _check(out, _reference(q, k, v, mask=mask), "mask")

    # 3) causal only
    out = attention(q, k, v, causal=True)
    jax.block_until_ready(out)
    _check(out, _reference(q, k, v, causal=True), "causal")

    # 4) causal + mask (keep key 0 so no causal row is fully key-masked, which
    #    is a degenerate uniform-softmax corner case in the torch reference)
    mask4 = mask.at[:, 0].set(True)
    out = attention(q, k, v, mask=mask4, causal=True)
    jax.block_until_ready(out)
    _check(out, _reference(q, k, v, mask=mask4, causal=True), "causal+mask")

    # 5) multi-tile online-softmax path (several q/kv tiles, causal tile skipping,
    #    clamped K/V index map, band/interior regimes)
    N2, Nk2 = 16, 16
    q2 = jax.random.normal(kq, (B, H, N2, D), dtype=jnp.float32)
    k2 = jax.random.normal(kk, (B, Nk2, D), dtype=jnp.float32)
    v2 = jax.random.normal(kv_, (B, Nk2, D), dtype=jnp.float32)
    mask2 = jax.random.bernoulli(km, 0.8, (B, Nk2)).at[:, 0].set(True)
    out = attention(q2, k2, v2, mask=mask2, causal=True, q_tile=8, kv_tile=8)
    jax.block_until_ready(out)
    _check(out, _reference(q2, k2, v2, mask=mask2, causal=True), "tiled")

    # 6) awkward lengths -> wrapper padding path (auto key mask, padded q rows sliced)
    N3 = Nk3 = 12
    q3 = jax.random.normal(kq, (B, H, N3, D), dtype=jnp.float32)
    k3 = jax.random.normal(kk, (B, Nk3, D), dtype=jnp.float32)
    v3 = jax.random.normal(kv_, (B, Nk3, D), dtype=jnp.float32)
    out = attention(q3, k3, v3, causal=True, q_tile=8, kv_tile=8)
    jax.block_until_ready(out)
    _check(out, _reference(q3, k3, v3, causal=True), "padded")

    # 7) fast path flags (bf16 MXU inputs + bf16 EUP exp) — looser tolerance
    out = attention(q2, k2, v2, mask=mask2, causal=True, q_tile=8, kv_tile=8,
                    use_bf16_matmul=True, use_bf16_exp=True)
    jax.block_until_ready(out)
    _check(out, _reference(q2, k2, v2, mask=mask2, causal=True), "bf16-fast",
           atol=5e-2, rtol=5e-2)

    print("KERNEL_OK")
</pallas_src>

<mosaic_0001>
module attributes {stable_mosaic.version = 11 : i64} {
  func.func @_flash_attn_kernel(%arg0: i32, %arg1: i32, %arg2: i32, %arg3: memref<1x4x8x32xf32, #tpu.memory_space<vmem>>, %arg4: memref<1x8x32xf32, #tpu.memory_space<vmem>>, %arg5: memref<1x8x32xf32, #tpu.memory_space<vmem>>, %arg6: memref<1x4x8x32xf32, #tpu.memory_space<vmem>>, %arg7: memref<32x32xf32, #tpu.memory_space<vmem>>, %arg8: memref<32x1xf32, #tpu.memory_space<vmem>>, %arg9: memref<32x1xf32, #tpu.memory_space<vmem>>, %arg10: memref<32x32xf32, #tpu.memory_space<vmem>>) attributes {dimension_semantics = [#tpu.dimension_semantics<parallel>, #tpu.dimension_semantics<parallel>, #tpu.dimension_semantics<arbitrary>], iteration_bounds = array<i64: 2, 1, 1>, scalar_prefetch = 0 : i64, scratch_operands = 4 : i64, tpu.core_type = #tpu.core_type<tc>, window_params = [{transform_indices = @transform_0, window_bounds = array<i64: 1, 4, 8, 32>}, {transform_indices = @transform_1, window_bounds = array<i64: 1, 8, 32>}, {transform_indices = @transform_2, window_bounds = array<i64: 1, 8, 32>}, {transform_indices = @transform_3, window_bounds = array<i64: 1, 4, 8, 32>}]} {
    %c0_i32 = arith.constant 0 : i32
    %0 = arith.cmpi eq, %arg2, %c0_i32 : i32
    %1 = arith.extui %0 : i1 to i32
    %c0_i32_0 = arith.constant 0 : i32
    %2 = arith.cmpi ne, %1, %c0_i32_0 : i32
    scf.if %2 {
      %cst_25 = arith.constant -3.40282347E+38 : f32
      %34 = vector.broadcast %cst_25 : f32 to vector<32x1xf32>
      %c0_26 = arith.constant 0 : index
      %c0_27 = arith.constant 0 : index
      %35 = vector.load %arg8[%c0_26, %c0_27] : memref<32x1xf32, #tpu.memory_space<vmem>>, vector<32x1xf32>
      tpu.vector_store %arg8[%c0_26, %c0_27], %34 {strides = array<i32>} : memref<32x1xf32, #tpu.memory_space<vmem>>, vector<32x1xf32>,
      %cst_28 = arith.constant 0.000000e+00 : f32
      %36 = vector.broadcast %cst_28 : f32 to vector<32x1xf32>
      %c0_29 = arith.constant 0 : index
      %c0_30 = arith.constant 0 : index
      %37 = vector.load %arg9[%c0_29, %c0_30] : memref<32x1xf32, #tpu.memory_space<vmem>>, vector<32x1xf32>
      tpu.vector_store %arg9[%c0_29, %c0_30], %36 {strides = array<i32>} : memref<32x1xf32, #tpu.memory_space<vmem>>, vector<32x1xf32>,
      %cst_31 = arith.constant 0.000000e+00 : f32
      %38 = vector.broadcast %cst_31 : f32 to vector<32x32xf32>
      %c0_32 = arith.constant 0 : index
      %c0_33 = arith.constant 0 : index
      %39 = vector.load %arg10[%c0_32, %c0_33] : memref<32x32xf32, #tpu.memory_space<vmem>>, vector<32x32xf32>
      tpu.vector_store %arg10[%c0_32, %c0_33], %38 {strides = array<i32>} : memref<32x32xf32, #tpu.memory_space<vmem>>, vector<32x32xf32>,
      %c0_34 = arith.constant 0 : index
      %c0_35 = arith.constant 0 : index
      %c0_36 = arith.constant 0 : index
      %c0_37 = arith.constant 0 : index
      %40 = vector.load %arg3[%c0_34, %c0_35, %c0_36, %c0_37] : memref<1x4x8x32xf32, #tpu.memory_space<vmem>>, vector<1x4x8x32xf32>
      %41 = vector.shape_cast %40 : vector<1x4x8x32xf32> to vector<4x8x32xf32>
      %42 = vector.shape_cast %41 : vector<4x8x32xf32> to vector<32x32xf32>
      %cst_38 = arith.constant 0.176776692 : f32
      %43 = vector.broadcast %cst_38 : f32 to vector<32x32xf32>
      %44 = arith.mulf %42, %43 : vector<32x32xf32>
      %c0_39 = arith.constant 0 : index
      %c0_40 = arith.constant 0 : index
      %45 = vector.load %arg7[%c0_39, %c0_40] : memref<32x32xf32, #tpu.memory_space<vmem>>, vector<32x32xf32>
      tpu.vector_store %arg7[%c0_39, %c0_40], %44 {strides = array<i32>} : memref<32x32xf32, #tpu.memory_space<vmem>>, vector<32x32xf32>,
    } else {
    }
    %c0 = arith.constant 0 : index
    %c0_1 = arith.constant 0 : index
    %c0_2 = arith.constant 0 : index
    %3 = vector.load %arg4[%c0, %c0_1, %c0_2] : memref<1x8x32xf32, #tpu.memory_space<vmem>>, vector<1x8x32xf32>
    %4 = vector.shape_cast %3 : vector<1x8x32xf32> to vector<8x32xf32>
    %c0_3 = arith.constant 0 : index
    %c0_4 = arith.constant 0 : index
    %5 = vector.load %arg7[%c0_3, %c0_4] : memref<32x32xf32, #tpu.memory_space<vmem>>, vector<32x32xf32>
    %cst = arith.constant dense<0.000000e+00> : vector<32x8xf32>
    %6 = tpu.matmul %5, %4, %cst {dimension_numbers = #tpu.dot_dimension_numbers<[1], [1], [0], [0], [0, 0, 1, 0], [], []>} : vector<32x32xf32>, vector<8x32xf32>, vector<32x8xf32> -> vector<32x8xf32>
    %c0_5 = arith.constant 0 : index
    %c0_6 = arith.constant 0 : index
    %7 = vector.load %arg8[%c0_5, %c0_6] : memref<32x1xf32, #tpu.memory_space<vmem>>, vector<32x1xf32>
    %cst_7 = arith.constant dense<0xFF800000> : vector<32xf32>
    %8 = vector.multi_reduction <maximumf>, %6, %cst_7 [1] : vector<32x8xf32> to vector<32xf32>
    %9 = vector.shape_cast %8 : vector<32xf32> to vector<32x1xf32>
    %10 = arith.maximumf %7, %9 : vector<32x1xf32>
    %11 = arith.subf %7, %10 : vector<32x1xf32>
    %12 = math.exp %11 : vector<32x1xf32>
    %13 = vector.broadcast %10 : vector<32x1xf32> to vector<32x8xf32>
    %14 = arith.subf %6, %13 : vector<32x8xf32>
    %15 = math.exp %14 : vector<32x8xf32>
    %c0_8 = arith.constant 0 : index
    %c0_9 = arith.constant 0 : index
    %16 = vector.load %arg9[%c0_8, %c0_9] : memref<32x1xf32, #tpu.memory_space<vmem>>, vector<32x1xf32>
    %17 = arith.mulf %12, %16 : vector<32x1xf32>
    %cst_10 = arith.constant dense<0.000000e+00> : vector<32xf32>
    %18 = vector.multi_reduction <add>, %15, %cst_10 [1] : vector<32x8xf32> to vector<32xf32>
    %19 = vector.shape_cast %18 : vector<32xf32> to vector<32x1xf32>
    %20 = arith.addf %17, %19 : vector<32x1xf32>
    %c0_11 = arith.constant 0 : index
    %c0_12 = arith.constant 0 : index
    %21 = vector.load %arg9[%c0_11, %c0_12] : memref<32x1xf32, #tpu.memory_space<vmem>>, vector<32x1xf32>
    tpu.vector_store %arg9[%c0_11, %c0_12], %20 {strides = array<i32>} : memref<32x1xf32, #tpu.memory_space<vmem>>, vector<32x1xf32>,
    %c0_13 = arith.constant 0 : index
    %c0_14 = arith.constant 0 : index
    %c0_15 = arith.constant 0 : index
    %22 = vector.load %arg5[%c0_13, %c0_14, %c0_15] : memref<1x8x32xf32, #tpu.memory_space<vmem>>, vector<1x8x32xf32>
    %23 = vector.shape_cast %22 : vector<1x8x32xf32> to vector<8x32xf32>
    %c0_16 = arith.constant 0 : index
    %c0_17 = arith.constant 0 : index
    %24 = vector.load %arg10[%c0_16, %c0_17] : memref<32x32xf32, #tpu.memory_space<vmem>>, vector<32x32xf32>
    %25 = vector.broadcast %12 : vector<32x1xf32> to vector<32x32xf32>
    %26 = arith.mulf %25, %24 : vector<32x32xf32>
    %cst_18 = arith.constant dense<0.000000e+00> : vector<32x32xf32>
    %27 = tpu.matmul %15, %23, %cst_18 {dimension_numbers = #tpu.dot_dimension_numbers<[1], [0], [0], [1], [0, 0, 1, 1], [], []>} : vector<32x8xf32>, vector<8x32xf32>, vector<32x32xf32> -> vector<32x32xf32>
    %28 = arith.addf %26, %27 : vector<32x32xf32>
    %c0_19 = arith.constant 0 : index
    %c0_20 = arith.constant 0 : index
    %29 = vector.load %arg10[%c0_19, %c0_20] : memref<32x32xf32, #tpu.memory_space<vmem>>, vector<32x32xf32>
    tpu.vector_store %arg10[%c0_19, %c0_20], %28 {strides = array<i32>} : memref<32x32xf32, #tpu.memory_space<vmem>>, vector<32x32xf32>,
    %c0_21 = arith.constant 0 : index
    %c0_22 = arith.constant 0 : index
    %30 = vector.load %arg8[%c0_21, %c0_22] : memref<32x1xf32, #tpu.memory_space<vmem>>, vector<32x1xf32>
    tpu.vector_store %arg8[%c0_21, %c0_22], %10 {strides = array<i32>} : memref<32x1xf32, #tpu.memory_space<vmem>>, vector<32x1xf32>,
    %c0_i32_23 = arith.constant 0 : i32
    %31 = arith.cmpi eq, %arg2, %c0_i32_23 : i32
    %32 = arith.extui %31 : i1 to i32
    %c0_i32_24 = arith.constant 0 : i32
    %33 = arith.cmpi ne, %32, %c0_i32_24 : i32
    scf.if %33 {
      %c0_25 = arith.constant 0 : index
      %c0_26 = arith.constant 0 : index
      %34 = vector.load %arg10[%c0_25, %c0_26] : memref<32x32xf32, #tpu.memory_space<vmem>>, vector<32x32xf32>
      %c0_27 = arith.constant 0 : index
      %c0_28 = arith.constant 0 : index
      %35 = vector.load %arg9[%c0_27, %c0_28] : memref<32x1xf32, #tpu.memory_space<vmem>>, vector<32x1xf32>
      %36 = tpu.reciprocal %35 : vector<32x1xf32> -> vector<32x1xf32>
      %37 = vector.broadcast %36 : vector<32x1xf32> to vector<32x32xf32>
      %38 = arith.mulf %34, %37 : vector<32x32xf32>
      %39 = vector.shape_cast %38 : vector<32x32xf32> to vector<4x8x32xf32>
      %c0_29 = arith.constant 0 : index
      %c0_30 = arith.constant 0 : index
      %c0_31 = arith.constant 0 : index
      %c0_32 = arith.constant 0 : index
      %40 = vector.load %arg6[%c0_29, %c0_30, %c0_31, %c0_32] : memref<1x4x8x32xf32, #tpu.memory_space<vmem>>, vector<1x4x8x32xf32>
      %41 = vector.shape_cast %40 : vector<1x4x8x32xf32> to vector<4x8x32xf32>
      %42 = vector.shape_cast %39 : vector<4x8x32xf32> to vector<1x4x8x32xf32>
      tpu.vector_store %arg6[%c0_29, %c0_30, %c0_31, %c0_32], %42 {strides = array<i32>} : memref<1x4x8x32xf32, #tpu.memory_space<vmem>>, vector<1x4x8x32xf32>,
    } else {
    }
    return
  }
  func.func @transform_0(%arg0: i32, %arg1: i32, %arg2: i32) -> (i32, i32, i32, i32) {
    %c0_i32 = arith.constant 0 : i32
    %c0_i32_0 = arith.constant 0 : i32
    %c0_i32_1 = arith.constant 0 : i32
    return %arg0, %c0_i32, %arg1, %c0_i32_0 : i32, i32, i32, i32
  }
  func.func @transform_1(%arg0: i32, %arg1: i32, %arg2: i32) -> (i32, i32, i32) {
    %c0_i32 = arith.constant 0 : i32
    %c0_i32_0 = arith.constant 0 : i32
    return %arg0, %arg2, %c0_i32 : i32, i32, i32
  }
  func.func @transform_2(%arg0: i32, %arg1: i32, %arg2: i32) -> (i32, i32, i32) {
    %c0_i32 = arith.constant 0 : i32
    %c0_i32_0 = arith.constant 0 : i32
    return %arg0, %arg2, %c0_i32 : i32, i32, i32
  }
  func.func @transform_3(%arg0: i32, %arg1: i32, %arg2: i32) -> (i32, i32, i32, i32) {
    %c0_i32 = arith.constant 0 : i32
    %c0_i32_0 = arith.constant 0 : i32
    %c0_i32_1 = arith.constant 0 : i32
    return %arg0, %c0_i32, %arg1, %c0_i32_0 : i32, i32, i32, i32
  }
}

</mosaic_0001>

<llo_original>
// kernel: tpu_custom_call.1
$region0: #{tpu_custom_call.1}
  #allocation0 [shape = 'u32[]', space=smem, size = 0x4, offset = 0x4, fixed_abs, tag = 'smem constant byte address 0x4 - core index']
  #allocation1 [shape = 'u32[72,128]{1,0:T(1,128)}', space=vmem, size = 0x9000, scoped, tag = 'internal scratch']
  #allocation2 [shape = 'f32[32,32]{1,0:T(8,128)}', space=vmem, size = 0x4000, scoped, tag = 'scratch operand']
  #allocation3 [shape = 'f32[32,1]{1,0:T(8,128)}', space=vmem, size = 0x4000, scoped, tag = 'scratch operand']
  #allocation4 [shape = 'f32[32,1]{1,0:T(8,128)}', space=vmem, size = 0x4000, scoped, tag = 'scratch operand']
  #allocation5 [shape = 'f32[32,32]{1,0:T(8,128)}', space=vmem, size = 0x4000, scoped, tag = 'scratch operand']
  %s0 = inlined_call_operand.hbm [shape: f32[2,4,8,32], index: 0, kind: input, shape index: {}]
  %s1 = inlined_call_operand.hbm [shape: f32[2,8,32], index: 1, kind: input, shape index: {}]
  %s2 = inlined_call_operand.hbm [shape: f32[2,8,32], index: 2, kind: input, shape index: {}]
  %s3 = inlined_call_operand.hbm [shape: f32[2,4,8,32], index: 3, kind: output, shape index: {}]
  %s4 = sld [smem:[#allocation0]]
  $region65: #{tpu_custom_call.1} parent=0
    _
  %s6 = ssub.s32 1, %s4
  %s7 = scalar_select 0, %s6, %s4
  $region1: #{tpu_custom_call.1} parent=0
    #allocation6 [shape = 'u8[32768]{0}', space=vmem, size = 0x8000, scoped, tag = 'input window, operand 0']
    #allocation7 [shape = 's32[2]{0}', space=sflag, size = 0x8, scoped, tag = 'scoped memory for tpu_custom_call.1']
    #allocation8 [shape = 's32[2]{0}', space=sflag, size = 0x8, scoped, tag = 'scoped memory for tpu_custom_call.1']
    #allocation9 [shape = 'u8[8192]{0}', space=vmem, size = 0x2000, scoped, tag = 'input window, operand 1']
    #allocation10 [shape = 's32[2]{0}', space=sflag, size = 0x8, scoped, tag = 'scoped memory for tpu_custom_call.1']
    #allocation11 [shape = 'u8[8192]{0}', space=vmem, size = 0x2000, scoped, tag = 'input window, operand 2']
    #allocation12 [shape = 'u8[32768]{0}', space=vmem, size = 0x8000, scoped, tag = 'output window, operand 0']
    %8 = vsyncpa [#allocation7], 0
    %s9 = scalar_lea.sflag [#allocation7], 1
    %10 = vsyncpa %s9, 0
    %11 = vsyncpa [#allocation10], 0
    %s12 = scalar_lea.sflag [#allocation10], 1
    %13 = vsyncpa %s12, 0
    %14 = vsyncpa [#allocation8], 0
    %s15 = scalar_lea.sflag [#allocation8], 1
    %16 = vsyncpa %s15, 0
    loop: start=0, step=1, limit=4
    $region2: #{tpu_custom_call.1} parent=1 // loop_pre_header
      _
    $region3: #{tpu_custom_call.1} parent=1 // loop_header
      %s18 = sphi 0, %s22
      %p19 = scmp.ge.s32.totalorder %s18, 4
      %s25 = sphi 0, %s44
      %s26 = sphi 0, %s40
      %s27 = sphi 0, %s36
      %s28 = sphi 0, %s25
      %s29 = sphi 0, %s26
      %s30 = sphi 0, %s27
      %s31 = sphi 0, %s28
      %s32 = sphi 0, %s29
      %s33 = sphi 0, %s30
      %s49 = sphi 0, %s51
      %s52 = sphi 0, %s49
      %s53 = sphi 0, %s52
      %s69 = sphi 0, %s53
      %s77 = sphi 0, %s79
      %s80 = sphi 0, %s77
      %s81 = sphi 0, %s80
      %s97 = sphi 0, %s81
      %s105 = sphi 0, %s107
      %s108 = sphi 0, %s105
      %s109 = sphi 0, %s108
      %s125 = sphi 0, %s109
      %s133 = sphi 0, %s135
      %s136 = sphi 0, %s133
      %s137 = sphi 0, %s136
      %s153 = sphi 0, %s137
    $region4: #{tpu_custom_call.1} parent=1 // loop_header_branch
      %21 = sbr.rel (%p19) target = $region8
    $region5: #{tpu_custom_call.1} parent=1 // loop_body
      %s23 = ssub.s32 %s18, 1
      %s24 = ssub.s32 %s18, 2
      %s34 = sadd.s32 1, %s27
      %p35 = scmp.ge.s32.totalorder %s34, 1
      %s36 = scalar_select %p35, 0, %s34
      %s37 = sadd.s32 1, %s26
      %s38 = scalar_select %p35, %s37, %s26
      %p39 = scmp.ge.s32.totalorder %s38, 1
      %s40 = scalar_select %p39, 0, %s38
      %s41 = sadd.s32 1, %s25
      %s42 = scalar_select %p39, %s41, %s25
      %p43 = scmp.ge.s32.totalorder %s42, 2
      %s44 = scalar_select %p43, 0, %s42
      %s45 = ssub.s32 %s25, %s44
      %s46 = ssub.s32 %s26, %s40
      %s47 = sor.u32 %s45, %s46
      %p48 = scmp.eq.s32.totalorder %s47, 0
      %s50 = sadd.s32 %s49, 1
      %s51 = scalar_select %p48, %s49, %s50
      %p54 = pneg %p48
      %p55 = scmp.eq.s32.totalorder %s18, 1
      %p56 = por %p54, %p55
      %p57 = scmp.ne.s32.totalorder %s49, %s52
      %p58 = scmp.eq.s32.totalorder %s18, 0
      %p59 = por %p57, %p58
      %p60 = scmp.ne.s32.totalorder %s49, %s52
      %p61 = scmp.eq.s32.totalorder %s23, 1
      %p62 = por %p60, %p61
      %p63 = scmp.ne.s32.totalorder %s52, %s53
      %p64 = scmp.eq.s32.totalorder %s23, 0
      %p65 = por %p63, %p64
      %p66 = scmp.ne.s32.totalorder %s52, %s53
      %p67 = scmp.eq.s32.totalorder %s24, 1
      %p68 = por %p66, %p67
      %p70 = scmp.ne.s32.totalorder %s53, %s69
      %p71 = scmp.eq.s32.totalorder %s24, 0
      %p72 = por %p70, %p71
      %s73 = ssub.s32 %s25, %s44
      %s74 = ssub.s32 %s27, %s36
      %s75 = sor.u32 %s73, %s74
      %p76 = scmp.eq.s32.totalorder %s75, 0
      %s78 = sadd.s32 %s77, 1
      %s79 = scalar_select %p76, %s77, %s78
      %p82 = pneg %p76
      %p83 = scmp.eq.s32.totalorder %s18, 1
      %p84 = por %p82, %p83
      %p85 = scmp.ne.s32.totalorder %s77, %s80
      %p86 = scmp.eq.s32.totalorder %s18, 0
      %p87 = por %p85, %p86
      %p88 = scmp.ne.s32.totalorder %s77, %s80
      %p89 = scmp.eq.s32.totalorder %s23, 1
      %p90 = por %p88, %p89
      %p91 = scmp.ne.s32.totalorder %s80, %s81
      %p92 = scmp.eq.s32.totalorder %s23, 0
      %p93 = por %p91, %p92
      %p94 = scmp.ne.s32.totalorder %s80, %s81
      %p95 = scmp.eq.s32.totalorder %s24, 1
      %p96 = por %p94, %p95
      %p98 = scmp.ne.s32.totalorder %s81, %s97
      %p99 = scmp.eq.s32.totalorder %s24, 0
      %p100 = por %p98, %p99
      %s101 = ssub.s32 %s25, %s44
      %s102 = ssub.s32 %s27, %s36
      %s103 = sor.u32 %s101, %s102
      %p104 = scmp.eq.s32.totalorder %s103, 0
      %s106 = sadd.s32 %s105, 1
      %s107 = scalar_select %p104, %s105, %s106
      %p110 = pneg %p104
      %p111 = scmp.eq.s32.totalorder %s18, 1
      %p112 = por %p110, %p111
      %p113 = scmp.ne.s32.totalorder %s105, %s108
      %p114 = scmp.eq.s32.totalorder %s18, 0
      %p115 = por %p113, %p114
      %p116 = scmp.ne.s32.totalorder %s105, %s108
      %p117 = scmp.eq.s32.totalorder %s23, 1
      %p118 = por %p116, %p117
      %p119 = scmp.ne.s32.totalorder %s108, %s109
      %p120 = scmp.eq.s32.totalorder %s23, 0
      %p121 = por %p119, %p120
      %p122 = scmp.ne.s32.totalorder %s108, %s109
      %p123 = scmp.eq.s32.totalorder %s24, 1
      %p124 = por %p122, %p123
      %p126 = scmp.ne.s32.totalorder %s109, %s125
      %p127 = scmp.eq.s32.totalorder %s24, 0
      %p128 = por %p126, %p127
      %s129 = ssub.s32 %s25, %s44
      %s130 = ssub.s32 %s26, %s40
      %s131 = sor.u32 %s129, %s130
      %p132 = scmp.eq.s32.totalorder %s131, 0
      %s134 = sadd.s32 %s133, 1
      %s135 = scalar_select %p132, %s133, %s134
      %p138 = pneg %p132
      %p139 = scmp.eq.s32.totalorder %s18, 1
      %p140 = por %p138, %p139
      %p141 = scmp.ne.s32.totalorder %s133, %s136
      %p142 = scmp.eq.s32.totalorder %s18, 0
      %p143 = por %p141, %p142
      %p144 = scmp.ne.s32.totalorder %s133, %s136
      %p145 = scmp.eq.s32.totalorder %s23, 1
      %p146 = por %p144, %p145
      %p147 = scmp.ne.s32.totalorder %s136, %s137
      %p148 = scmp.eq.s32.totalorder %s23, 0
      %p149 = por %p147, %p148
      %p150 = scmp.ne.s32.totalorder %s136, %s137
      %p151 = scmp.eq.s32.totalorder %s24, 1
      %p152 = por %p150, %p151
      %p154 = scmp.ne.s32.totalorder %s137, %s153
      %p155 = scmp.eq.s32.totalorder %s24, 0
      %p156 = por %p154, %p155
      %p157 = scmp.le.s32.totalorder 1, %s18
      %p158 = scmp.lt.s32.totalorder %s18, 3
      %p159 = pnand %p157, %p158
      %p160 = pneg %p159
      // Predicated region
      $region9: #{tpu_custom_call.1} parent=5 // pred_check
        _
      $region10: #{tpu_custom_call.1} parent=5 // pred_check_branch
        %162 = sbr.rel (%p159) target = $region12
      $region11: #{tpu_custom_call.1} parent=5 // pred_region
        %s163 = ssub.s32 %s18, 1
      $region12: #{tpu_custom_call.1} parent=5 // pred_fallthru
        _
      %p164 = scmp.lt.s32.totalorder %s18, 2
      // Predicated region
      $region13: #{tpu_custom_call.1} parent=5 // pred_check
        %p165 = pneg %p164
      $region14: #{tpu_custom_call.1} parent=5 // pred_check_branch
        %167 = sbr.rel (%p165) target = $region16
      $region15: #{tpu_custom_call.1} parent=5 // pred_region
        // Predicated region
        $region17: #{tpu_custom_call.1} parent=15 // pred_check
          %p168 = pneg %p59
        $region18: #{tpu_custom_call.1} parent=15 // pred_check_branch
          %170 = sbr.rel (%p168) target = $region20
        $region19: #{tpu_custom_call.1} parent=15 // pred_region
          %s171 = sand.u32 %s49, 1
          %s172 = scalar_lea.sflag [#allocation7], %s171
          %s173 = sand.u32 %s49, 1
          %s174 = smul.addr %s173, 32
          %s175 = scalar_lea.vmem [#allocation6], %s174
          %177 = vsyncadd %s172, 0
          %s178 = smul.addr %s25, 4
          %s179 = sadd.s32 %s26, %s178
          %s180 = smul.addr %s179, 8
          %s181 = scalar_lea.hbm %s0, %s180
          %s182 = sshll.u32 %s181, 4
          %s183 = int_to_ptr.hbm [resolvable:$true] %s182
          %s184 = sshll.u32 %s175, 4
          %s185 = int_to_ptr.vmem [resolvable:$true] %s184
          %190 = dma.hbm_to_vmem [thread:$0]  %s183, 512, %s185, %s172, 128, 128, 8
        $region20: #{tpu_custom_call.1} parent=15 // pred_fallthru
          _
        // Predicated region
        $region21: #{tpu_custom_call.1} parent=15 // pred_check
          %p191 = pneg %p87
        $region22: #{tpu_custom_call.1} parent=15 // pred_check_branch
          %193 = sbr.rel (%p191) target = $region24
        $region23: #{tpu_custom_call.1} parent=15 // pred_region
          %s194 = sand.u32 %s18, 1
          %s195 = scalar_lea.sflag [#allocation10], %s194
          %s196 = sand.u32 %s77, 1
          %s197 = smul.addr %s196, 8
          %s198 = scalar_lea.vmem [#allocation9], %s197
          %200 = vsyncadd %s195, 0
          %s201 = sadd.s32 %s27, %s25
          %s202 = smul.addr %s201, 8
          %s203 = scalar_lea.hbm %s1, %s202
          %s205 = sshll.u32 %s203, 4
          %s206 = int_to_ptr.hbm [resolvable:$true] %s205
          %s207 = sshll.u32 %s198, 4
          %s208 = int_to_ptr.vmem [resolvable:$true] %s207
          %210 = dma.hbm_to_vmem [thread:$0]  %s206, 128, %s208, %s195
        $region24: #{tpu_custom_call.1} parent=15 // pred_fallthru
          _
        // Predicated region
        $region25: #{tpu_custom_call.1} parent=15 // pred_check
          %p211 = pneg %p115
        $region26: #{tpu_custom_call.1} parent=15 // pred_check_branch
          %213 = sbr.rel (%p211) target = $region28
        $region27: #{tpu_custom_call.1} parent=15 // pred_region
          %s214 = sand.u32 %s18, 1
          %s215 = scalar_lea.sflag [#allocation10], %s214
          %s216 = sand.u32 %s105, 1
          %s217 = smul.addr %s216, 8
          %s218 = scalar_lea.vmem [#allocation11], %s217
          %220 = vsyncadd %s215, 0
          %s221 = sadd.s32 %s27, %s25
          %s222 = smul.addr %s221, 8
          %s223 = scalar_lea.hbm %s2, %s222
          %s225 = sshll.u32 %s223, 4
          %s226 = int_to_ptr.hbm [resolvable:$true] %s225
          %s227 = sshll.u32 %s218, 4
          %s228 = int_to_ptr.vmem [resolvable:$true] %s227
          %230 = dma.hbm_to_vmem [thread:$0]  %s226, 128, %s228, %s215
        $region28: #{tpu_custom_call.1} parent=15 // pred_fallthru
          _
      $region16: #{tpu_custom_call.1} parent=5 // pred_fallthru
        _
      %p231 = scmp.le.s32.totalorder 1, %s18
      %p232 = scmp.lt.s32.totalorder %s18, 3
      %p233 = pnand %p231, %p232
      %p234 = pneg %p233
      // Predicated region
      $region29: #{tpu_custom_call.1} parent=5 // pred_check
        _
      $region30: #{tpu_custom_call.1} parent=5 // pred_check_branch
        %236 = sbr.rel (%p233) target = $region32
      $region31: #{tpu_custom_call.1} parent=5 // pred_region
        %s237 = ssub.s32 %s18, 1
        %s238 = sand.u32 %s52, 1
        %s239 = scalar_lea.sflag [#allocation7], %s238
        %s240 = sand.u32 %s52, 1
        %s241 = smul.addr %s240, 32
        %s242 = scalar_lea.vmem [#allocation6], %s241
        // Predicated region
        $region33: #{tpu_custom_call.1} parent=31 // pred_check
          %p243 = pneg %p65
        $region34: #{tpu_custom_call.1} parent=31 // pred_check_branch
          %245 = sbr.rel (%p243) target = $region36
        $region35: #{tpu_custom_call.1} parent=31 // pred_region
          %247 = dma.done %s239, 512
        $region36: #{tpu_custom_call.1} parent=31 // pred_fallthru
          _
        %s248 = sand.u32 %s23, 1
        %s249 = scalar_lea.sflag [#allocation10], %s248
        %s250 = sand.u32 %s80, 1
        %s251 = smul.addr %s250, 8
        %s252 = scalar_lea.vmem [#allocation9], %s251
        // Predicated region
        $region37: #{tpu_custom_call.1} parent=31 // pred_check
          %p253 = pneg %p93
        $region38: #{tpu_custom_call.1} parent=31 // pred_check_branch
          %255 = sbr.rel (%p253) target = $region40
        $region39: #{tpu_custom_call.1} parent=31 // pred_region
          %257 = dma.done %s249, 128
        $region40: #{tpu_custom_call.1} parent=31 // pred_fallthru
          _
        %s258 = sand.u32 %s23, 1
        %s259 = scalar_lea.sflag [#allocation10], %s258
        %s260 = sand.u32 %s108, 1
        %s261 = smul.addr %s260, 8
        %s262 = scalar_lea.vmem [#allocation11], %s261
        // Predicated region
        $region41: #{tpu_custom_call.1} parent=31 // pred_check
          %p263 = pneg %p121
        $region42: #{tpu_custom_call.1} parent=31 // pred_check_branch
          %265 = sbr.rel (%p263) target = $region44
        $region43: #{tpu_custom_call.1} parent=31 // pred_region
          %267 = dma.done %s259, 128
        $region44: #{tpu_custom_call.1} parent=31 // pred_fallthru
          _
        %s268 = sand.u32 %s52, 1
        %s269 = scalar_lea.sflag [#allocation7], %s268
        %s270 = sand.u32 %s52, 1
        %s271 = smul.addr %s270, 32
        %s272 = scalar_lea.vmem [#allocation6], %s271
        %p273 = pneg %p65
        %p274 = pneg %p62
        %s275 = sand.u32 %s23, 1
        %s276 = scalar_lea.sflag [#allocation10], %s275
        %s277 = sand.u32 %s80, 1
        %s278 = smul.addr %s277, 8
        %s279 = scalar_lea.vmem [#allocation9], %s278
        %p280 = pneg %p93
        %p281 = pneg %p90
        %s282 = sand.u32 %s23, 1
        %s283 = scalar_lea.sflag [#allocation10], %s282
        %s284 = sand.u32 %s108, 1
        %s285 = smul.addr %s284, 8
        %s286 = scalar_lea.vmem [#allocation11], %s285
        %p287 = pneg %p121
        %p288 = pneg %p118
        %p289 = pneg %p149
        %p290 = pneg %p146
        %s291 = sand.u32 %s136, 1
        %s292 = scalar_lea.sflag [#allocation8], %s291
        %s293 = sand.u32 %s136, 1
        %s294 = smul.addr %s293, 32
        %s295 = scalar_lea.vmem [#allocation12], %s294
        %p296 = scmp.eq.s32.totalorder %s30, 0
        // Predicated region
        $region45: #{tpu_custom_call.1} parent=31 // pred_check
          %p297 = pneg %p296
        $region46: #{tpu_custom_call.1} parent=31 // pred_check_branch
          %299 = sbr.rel (%p297) target = $region48
        $region47: #{tpu_custom_call.1} parent=31 // pred_region
          %vm300 = vcmask 7168
          %301 = vst.msk [vmem:[#allocation3] sm:$0xff] %vm300, -3.4028235e+38
          %302 = vst.msk [vmem:[#allocation3 + $0x8] sm:$0xff] %vm300, -3.4028235e+38
          %303 = vst.msk [vmem:[#allocation3 + $0x10] sm:$0xff] %vm300, -3.4028235e+38
          %304 = vst.msk [vmem:[#allocation3 + $0x18] sm:$0xff] %vm300, -3.4028235e+38
          %305 = vst.msk [vmem:[#allocation4] sm:$0xff] %vm300, 0.0
          %306 = vst.msk [vmem:[#allocation4 + $0x8] sm:$0xff] %vm300, 0.0
          %307 = vst.msk [vmem:[#allocation4 + $0x10] sm:$0xff] %vm300, 0.0
          %308 = vst.msk [vmem:[#allocation4 + $0x18] sm:$0xff] %vm300, 0.0
          %vm309 = vcmask 261120
          %310 = vst.msk [vmem:[#allocation5] sm:$0xff] %vm309, 0.0
          %311 = vst.msk [vmem:[#allocation5 + $0x8] sm:$0xff] %vm309, 0.0
          %312 = vst.msk [vmem:[#allocation5 + $0x10] sm:$0xff] %vm309, 0.0
          %313 = vst.msk [vmem:[#allocation5 + $0x18] sm:$0xff] %vm309, 0.0
          %v314 = vld [vmem:[%s242] sm:$0xff]
          %v315 = vld [vmem:[%s242 + $0x8] sm:$0xff]
          %v316 = vld [vmem:[%s242 + $0x10] sm:$0xff]
          %v317 = vld [vmem:[%s242 + $0x18] sm:$0xff]
          %v318 = vmul.f32 %v314, 0.17677669
          %v319 = vmul.f32 %v315, 0.17677669
          %v320 = vmul.f32 %v316, 0.17677669
          %v321 = vmul.f32 %v317, 0.17677669
          %322 = vst.msk [vmem:[#allocation2] sm:$0xff] %vm309, %v318
          %323 = vst.msk [vmem:[#allocation2 + $0x8] sm:$0xff] %vm309, %v319
          %324 = vst.msk [vmem:[#allocation2 + $0x10] sm:$0xff] %vm309, %v320
          %325 = vst.msk [vmem:[#allocation2 + $0x18] sm:$0xff] %vm309, %v321
        $region48: #{tpu_custom_call.1} parent=31 // pred_fallthru
          _
        %v326 = vld [vmem:[%s252] sm:$0xff]
        %v327 = vld [vmem:[#allocation2] sm:$0xff]
        %v328 = vld [vmem:[#allocation2 + $0x8] sm:$0xff]
        %v329 = vld [vmem:[#allocation2 + $0x10] sm:$0xff]
        %v330 = vld [vmem:[#allocation2 + $0x18] sm:$0xff]
        %vm331 = vcmask 261120
        %v333 = vsel %vm331, %v327, 0
        %v336 = vsel %vm331, %v328, 0
        %v339 = vsel %vm331, %v329, 0
        %v342 = vsel %vm331, %v330, 0
        %v345 = vsel %vm331, %v326, 0
        %347 = vmatpush.xpose.msra.mxu0 0.0
        %348 = vmatpush.xpose.msra.mxu0 0.0
        %349 = vmatpush.xpose.msra.mxu0 0.0
        %350 = vmatpush.xpose.msra.mxu0 0.0
        %351 = vmatpush.xpose.msra.mxu0 0.0
        %352 = vmatpush.xpose.msra.mxu0 0.0
        %353 = vmatpush.xpose.msra.mxu0 0.0
        %354 = vmatpush.xpose.msra.mxu0 0.0
        %355 = vmatpush.xpose.msra.mxu0 0.0
        %356 = vmatpush.xpose.msra.mxu0 0.0
        %357 = vmatpush.xpose.msra.mxu0 0.0
        %358 = vmatpush.xpose.msra.mxu0 0.0
        %359 = vmatpush.xpose.msra.mxu0 0.0
        %360 = vmatpush.xpose.msra.mxu0 0.0
        %361 = vmatpush.xpose.msra.mxu0 0.0
        %362 = vmatpush.xpose.msra.mxu0 %v345
        %363 = vmatmul.f32.gmra.mxu0 %v333
        %v364 = vpop.f32.mrf.mxu0
        %v365 = vadd.f32 0.0, %v364
        %366 = vmatmul.f32.gmra.mxu0 %v336
        %v367 = vpop.f32.mrf.mxu0
        %v368 = vadd.f32 0.0, %v367
        %369 = vmatmul.f32.gmra.mxu0 %v339
        %v370 = vpop.f32.mrf.mxu0
        %v371 = vadd.f32 0.0, %v370
        %372 = vmatmul.f32.gmra.mxu0 %v342
        %v373 = vpop.f32.mrf.mxu0
        %v374 = vadd.f32 0.0, %v373
        %375 = vdwg.mxu0
        %v376 = vld [vmem:[#allocation3] sm:$0xff]
        %v377 = vld [vmem:[#allocation3 + $0x8] sm:$0xff]
        %v378 = vld [vmem:[#allocation3 + $0x10] sm:$0xff]
        %v379 = vld [vmem:[#allocation3 + $0x18] sm:$0xff]
        %vm380 = vcmask 64512
        %v381 = vsel %vm380, %v365, -inf
        %382 = vmax.xlane.f32.xlu0 %v381
        %v383 = vpop.xlane.xlu0 %382
        %v384 = vsel %vm380, %v368, -inf
        %385 = vmax.xlane.f32.xlu0 %v384
        %v386 = vpop.xlane.xlu0 %385
        %v387 = vsel %vm380, %v371, -inf
        %388 = vmax.xlane.f32.xlu0 %v387
        %v389 = vpop.xlane.xlu0 %388
        %v390 = vsel %vm380, %v374, -inf
        %391 = vmax.xlane.f32.xlu0 %v390
        %v392 = vpop.xlane.xlu0 %391
        %v393 = vmax.f32 %v376, %v383
        %v394 = vmax.f32 %v377, %v386
        %v395 = vmax.f32 %v378, %v389
        %v396 = vmax.f32 %v379, %v392
        %v397 = vsub.f32 %v376, %v393
        %v398 = vsub.f32 %v377, %v394
        %v399 = vsub.f32 %v378, %v395
        %v400 = vsub.f32 %v379, %v396
        %v401 = vmul.f32 %v397, 1.442695
        %v402 = vpow.pop %v401
        %v403 = vmul.f32 %v398, 1.442695
        %v404 = vpow.pop %v403
        %v405 = vmul.f32 %v399, 1.442695
        %v406 = vpow.pop %v405
        %v407 = vmul.f32 %v400, 1.442695
        %v408 = vpow.pop %v407
        %410 = vset.pattern.permute.xlu0 0
        %411 = vperm.xlu0 %410, %v393
        %v412 = vpop.permute.xlu0 %411
        %415 = vset.pattern.permute.xlu0 0
        %416 = vperm.xlu0 %415, %v394
        %v417 = vpop.permute.xlu0 %416
        %420 = vset.pattern.permute.xlu0 0
        %421 = vperm.xlu0 %420, %v395
        %v422 = vpop.permute.xlu0 %421
        %425 = vset.pattern.permute.xlu0 0
        %426 = vperm.xlu0 %425, %v396
        %v427 = vpop.permute.xlu0 %426
        %v429 = vsub.f32 %v365, %v412
        %v430 = vsub.f32 %v368, %v417
        %v431 = vsub.f32 %v371, %v422
        %v432 = vsub.f32 %v374, %v427
        %v433 = vmul.f32 %v429, 1.442695
        %v434 = vpow.pop %v433
        %v435 = vmul.f32 %v430, 1.442695
        %v436 = vpow.pop %v435
        %v437 = vmul.f32 %v431, 1.442695
        %v438 = vpow.pop %v437
        %v439 = vmul.f32 %v432, 1.442695
        %v440 = vpow.pop %v439
        %v441 = vld [vmem:[#allocation4] sm:$0xff]
        %v442 = vld [vmem:[#allocation4 + $0x8] sm:$0xff]
        %v443 = vld [vmem:[#allocation4 + $0x10] sm:$0xff]
        %v444 = vld [vmem:[#allocation4 + $0x18] sm:$0xff]
        %v445 = vmul.f32 %v402, %v441
        %v446 = vmul.f32 %v404, %v442
        %v447 = vmul.f32 %v406, %v443
        %v448 = vmul.f32 %v408, %v444
        %v449 = vsel %vm380, %v434, 0.0
        %450 = vadd.xlane.f32.xlu0 %v449
        %v451 = vpop.xlane.xlu0 %450
        %v452 = vsel %vm380, %v436, 0.0
        %453 = vadd.xlane.f32.xlu0 %v452
        %v454 = vpop.xlane.xlu0 %453
        %v455 = vsel %vm380, %v438, 0.0
        %456 = vadd.xlane.f32.xlu0 %v455
        %v457 = vpop.xlane.xlu0 %456
        %v458 = vsel %vm380, %v440, 0.0
        %459 = vadd.xlane.f32.xlu0 %v458
        %v460 = vpop.xlane.xlu0 %459
        %v461 = vadd.f32 %v445, %v451
        %v462 = vadd.f32 %v446, %v454
        %v463 = vadd.f32 %v447, %v457
        %v464 = vadd.f32 %v448, %v460
        %vm465 = vcmask 7168
        %466 = vst.msk [vmem:[#allocation4] sm:$0xff] %vm465, %v461
        %467 = vst.msk [vmem:[#allocation4 + $0x8] sm:$0xff] %vm465, %v462
        %468 = vst.msk [vmem:[#allocation4 + $0x10] sm:$0xff] %vm465, %v463
        %469 = vst.msk [vmem:[#allocation4 + $0x18] sm:$0xff] %vm465, %v464
        %v470 = vld [vmem:[%s262] sm:$0xff]
        %v471 = vld [vmem:[#allocation5] sm:$0xff]
        %v472 = vld [vmem:[#allocation5 + $0x8] sm:$0xff]
        %v473 = vld [vmem:[#allocation5 + $0x10] sm:$0xff]
        %v474 = vld [vmem:[#allocation5 + $0x18] sm:$0xff]
        %476 = vset.pattern.permute.xlu0 0
        %477 = vperm.xlu0 %476, %v402
        %v478 = vpop.permute.xlu0 %477
        %481 = vset.pattern.permute.xlu0 0
        %482 = vperm.xlu0 %481, %v404
        %v483 = vpop.permute.xlu0 %482
        %486 = vset.pattern.permute.xlu0 0
        %487 = vperm.xlu0 %486, %v406
        %v488 = vpop.permute.xlu0 %487
        %491 = vset.pattern.permute.xlu0 0
        %492 = vperm.xlu0 %491, %v408
        %v493 = vpop.permute.xlu0 %492
        %v495 = vmul.f32 %v478, %v471
        %v496 = vmul.f32 %v483, %v472
        %v497 = vmul.f32 %v488, %v473
        %v498 = vmul.f32 %v493, %v474
        %v500 = vsel %vm380, %v434, 0
        %v503 = vsel %vm380, %v436, 0
        %v506 = vsel %vm380, %v438, 0
        %v509 = vsel %vm380, %v440, 0
        %511 = vmatpush.msra.mxu0 0.0
        %512 = vmatpush.msra.mxu0 0.0
        %513 = vmatpush.msra.mxu0 0.0
        %514 = vmatpush.msra.mxu0 0.0
        %515 = vmatpush.msra.mxu0 0.0
        %516 = vmatpush.msra.mxu0 0.0
        %517 = vmatpush.msra.mxu0 0.0
        %518 = vmatpush.msra.mxu0 0.0
        %519 = vmatpush.msra.mxu0 0.0
        %520 = vmatpush.msra.mxu0 0.0
        %521 = vmatpush.msra.mxu0 0.0
        %522 = vmatpush.msra.mxu0 0.0
        %523 = vmatpush.msra.mxu0 0.0
        %524 = vmatpush.msra.mxu0 0.0
        %525 = vmatpush.msra.mxu0 0.0
        %526 = vmatpush.msra.mxu0 %v470
        %527 = vmatmul.f32.gmra.mxu0 %v500
        %v528 = vpop.f32.mrf.mxu0
        %v529 = vadd.f32 0.0, %v528
        %530 = vmatmul.f32.gmra.mxu0 %v503
        %v531 = vpop.f32.mrf.mxu0
        %v532 = vadd.f32 0.0, %v531
        %533 = vmatmul.f32.gmra.mxu0 %v506
        %v534 = vpop.f32.mrf.mxu0
        %v535 = vadd.f32 0.0, %v534
        %536 = vmatmul.f32.gmra.mxu0 %v509
        %v537 = vpop.f32.mrf.mxu0
        %v538 = vadd.f32 0.0, %v537
        %539 = vdwg.mxu0
        %v540 = vadd.f32 %v495, %v529
        %v541 = vadd.f32 %v496, %v532
        %v542 = vadd.f32 %v497, %v535
        %v543 = vadd.f32 %v498, %v538
        %544 = vst.msk [vmem:[#allocation5] sm:$0xff] %vm331, %v540
        %545 = vst.msk [vmem:[#allocation5 + $0x8] sm:$0xff] %vm331, %v541
        %546 = vst.msk [vmem:[#allocation5 + $0x10] sm:$0xff] %vm331, %v542
        %547 = vst.msk [vmem:[#allocation5 + $0x18] sm:$0xff] %vm331, %v543
        %548 = vst.msk [vmem:[#allocation3] sm:$0xff] %vm465, %v393
        %549 = vst.msk [vmem:[#allocation3 + $0x8] sm:$0xff] %vm465, %v394
        %550 = vst.msk [vmem:[#allocation3 + $0x10] sm:$0xff] %vm465, %v395
        %551 = vst.msk [vmem:[#allocation3 + $0x18] sm:$0xff] %vm465, %v396
        // Predicated region
        $region49: #{tpu_custom_call.1} parent=31 // pred_check
          %p552 = pneg %p296
        $region50: #{tpu_custom_call.1} parent=31 // pred_check_branch
          %554 = sbr.rel (%p552) target = $region52
        $region51: #{tpu_custom_call.1} parent=31 // pred_region
          %v555 = vld [vmem:[#allocation5] sm:$0xff]
          %v556 = vld [vmem:[#allocation5 + $0x8] sm:$0xff]
          %v557 = vld [vmem:[#allocation5 + $0x10] sm:$0xff]
          %v558 = vld [vmem:[#allocation5 + $0x18] sm:$0xff]
          %v559 = vld [vmem:[#allocation4] sm:$0xff]
          %v560 = vld [vmem:[#allocation4 + $0x8] sm:$0xff]
          %v561 = vld [vmem:[#allocation4 + $0x10] sm:$0xff]
          %v562 = vld [vmem:[#allocation4 + $0x18] sm:$0xff]
          %v563 = vrcp.pop %v559
          %v564 = vmul.f32 %v559, %v563
          %v565 = vsub.f32 1.0, %v564
          %v566 = vmul.f32 %v563, %v565
          %v567 = vadd.f32 %v563, %v566
          %vm568 = vweird.f32 %v559
          %vm569 = vweird.f32 %v563
          %vm570 = vmor %vm568, %vm569
          %v571 = vsel %vm570, %v563, %v567
          %v572 = vand.u32 2147483647, %v559
          %vm573 = vcmp.eq.f32.partialorder %v572, 8.507059e+37
          %v574 = vand.u32 %v559, 2147483648
          %v575 = vor.u32 1.1754944e-38, %v574
          %v576 = vsel %vm573, %v575, %v571
          %v577 = vrcp.pop %v560
          %v578 = vmul.f32 %v560, %v577
          %v579 = vsub.f32 1.0, %v578
          %v580 = vmul.f32 %v577, %v579
          %v581 = vadd.f32 %v577, %v580
          %vm582 = vweird.f32 %v560
          %vm583 = vweird.f32 %v577
          %vm584 = vmor %vm582, %vm583
          %v585 = vsel %vm584, %v577, %v581
          %v586 = vand.u32 2147483647, %v560
          %vm587 = vcmp.eq.f32.partialorder %v586, 8.507059e+37
          %v588 = vand.u32 %v560, 2147483648
          %v589 = vor.u32 1.1754944e-38, %v588
          %v590 = vsel %vm587, %v589, %v585
          %v591 = vrcp.pop %v561
          %v592 = vmul.f32 %v561, %v591
          %v593 = vsub.f32 1.0, %v592
          %v594 = vmul.f32 %v591, %v593
          %v595 = vadd.f32 %v591, %v594
          %vm596 = vweird.f32 %v561
          %vm597 = vweird.f32 %v591
          %vm598 = vmor %vm596, %vm597
          %v599 = vsel %vm598, %v591, %v595
          %v600 = vand.u32 2147483647, %v561
          %vm601 = vcmp.eq.f32.partialorder %v600, 8.507059e+37
          %v602 = vand.u32 %v561, 2147483648
          %v603 = vor.u32 1.1754944e-38, %v602
          %v604 = vsel %vm601, %v603, %v599
          %v605 = vrcp.pop %v562
          %v606 = vmul.f32 %v562, %v605
          %v607 = vsub.f32 1.0, %v606
          %v608 = vmul.f32 %v605, %v607
          %v609 = vadd.f32 %v605, %v608
          %vm610 = vweird.f32 %v562
          %vm611 = vweird.f32 %v605
          %vm612 = vmor %vm610, %vm611
          %v613 = vsel %vm612, %v605, %v609
          %v614 = vand.u32 2147483647, %v562
          %vm615 = vcmp.eq.f32.partialorder %v614, 8.507059e+37
          %v616 = vand.u32 %v562, 2147483648
          %v617 = vor.u32 1.1754944e-38, %v616
          %v618 = vsel %vm615, %v617, %v613
          %620 = vset.pattern.permute.xlu0 0
          %621 = vperm.xlu0 %620, %v576
          %v622 = vpop.permute.xlu0 %621
          %625 = vset.pattern.permute.xlu0 0
          %626 = vperm.xlu0 %625, %v590
          %v627 = vpop.permute.xlu0 %626
          %630 = vset.pattern.permute.xlu0 0
          %631 = vperm.xlu0 %630, %v604
          %v632 = vpop.permute.xlu0 %631
          %635 = vset.pattern.permute.xlu0 0
          %636 = vperm.xlu0 %635, %v618
          %v637 = vpop.permute.xlu0 %636
          %v639 = vmul.f32 %v555, %v622
          %v640 = vmul.f32 %v556, %v627
          %v641 = vmul.f32 %v557, %v632
          %v642 = vmul.f32 %v558, %v637
          %643 = vst.msk [vmem:[%s295] sm:$0xff] %vm331, %v639
          %644 = vst.msk [vmem:[%s295 + $0x8] sm:$0xff] %vm331, %v640
          %645 = vst.msk [vmem:[%s295 + $0x10] sm:$0xff] %vm331, %v641
          %646 = vst.msk [vmem:[%s295 + $0x18] sm:$0xff] %vm331, %v642
        $region52: #{tpu_custom_call.1} parent=31 // pred_fallthru
          _
        %s647 = sand.u32 %s136, 1
        %s648 = scalar_lea.sflag [#allocation8], %s647
        %s649 = sand.u32 %s136, 1
        %s650 = smul.addr %s649, 32
        %s651 = scalar_lea.vmem [#allocation12], %s650
        // Predicated region
        $region53: #{tpu_custom_call.1} parent=31 // pred_check
          %p652 = pneg %p146
        $region54: #{tpu_custom_call.1} parent=31 // pred_check_branch
          %654 = sbr.rel (%p652) target = $region56
        $region55: #{tpu_custom_call.1} parent=31 // pred_region
          %656 = vsyncadd %s648, 0
          %s657 = smul.addr %s28, 4
          %s658 = sadd.s32 %s29, %s657
          %s659 = smul.addr %s658, 8
          %s660 = scalar_lea.hbm %s3, %s659
          %s661 = sshll.u32 %s651, 4
          %s662 = int_to_ptr.vmem [resolvable:$true] %s661
          %s663 = sshll.u32 %s660, 4
          %s664 = int_to_ptr.hbm [resolvable:$true] %s663
          %669 = dma.vmem_to_hbm [thread:$0]  %s662, 512, %s664, %s648, 128, 128, 8
        $region56: #{tpu_custom_call.1} parent=31 // pred_fallthru
          _
      $region32: #{tpu_custom_call.1} parent=5 // pred_fallthru
        _
      %p670 = scmp.le.s32.totalorder 2, %s18
      // Predicated region
      $region57: #{tpu_custom_call.1} parent=5 // pred_check
        %p671 = pneg %p670
      $region58: #{tpu_custom_call.1} parent=5 // pred_check_branch
        %673 = sbr.rel (%p671) target = $region60
      $region59: #{tpu_custom_call.1} parent=5 // pred_region
        %s674 = ssub.s32 %s18, 2
        // Predicated region
        $region61: #{tpu_custom_call.1} parent=59 // pred_check
          %p675 = pneg %p152
        $region62: #{tpu_custom_call.1} parent=59 // pred_check_branch
          %677 = sbr.rel (%p675) target = $region64
        $region63: #{tpu_custom_call.1} parent=59 // pred_region
          %s678 = sand.u32 %s137, 1
          %s679 = scalar_lea.sflag [#allocation8], %s678
          %s680 = sand.u32 %s137, 1
          %s681 = smul.addr %s680, 32
          %s682 = scalar_lea.vmem [#allocation12], %s681
          %684 = dma.done %s679, 512
        $region64: #{tpu_custom_call.1} parent=59 // pred_fallthru
          _
      $region60: #{tpu_custom_call.1} parent=5 // pred_fallthru
        _
    $region6: #{tpu_custom_call.1} parent=1 // loop_footer
      %s22 = sadd.s32 1, %s18
    $region7: #{tpu_custom_call.1} parent=1 // loop_footer_branch
      %17 = sbr.rel target = $region3
    $region8: #{tpu_custom_call.1} parent=1 // loop_exit
      _
    %685 = vsyncpa [#allocation7], 1
    %s686 = scalar_lea.sflag [#allocation7], 1
    %687 = vsyncpa %s686, 1
    %688 = vsyncpa [#allocation10], 1
    %s689 = scalar_lea.sflag [#allocation10], 1
    %690 = vsyncpa %s689, 1
    %691 = vsyncpa [#allocation8], 1
    %s692 = scalar_lea.sflag [#allocation8], 1
    %693 = vsyncpa %s692, 1

</llo_original>
